<compile_context>
chip_gen: v7x
topology: tpu7x:2x2x1
jax: 0.10.0
libtpu: 0.0.40
codegen_flags: <defaults>
</compile_context>

<pallas_src>
import functools

import jax
import jax.numpy as jnp
from jax.experimental import pallas as pl
from jax.experimental.pallas import tpu as pltpu


def rope_kernel(cos_ref, sin_ref, x_ref, o_ref, *, heads):
    """One (1, ts*heads, D) tile of out = x*cos + rotate_half(x)*sin.

    cos_ref / sin_ref : (ts, D) f32 -- sin already carries the rotate_half sign
    (first half negated), so rotate_half reduces to a lane roll by D/2.
    Rows of x are (seq, head) pairs in row-major order, hence the xH row repeat.
    """
    x = x_ref[...]                                    # (1, rows, D) native dtype
    half = x.shape[-1] // 2
    rot = pltpu.roll(x, shift=half, axis=2)           # concat(x2, x1) per row (XLU)

    cos = cos_ref[...]
    sin = sin_ref[...]
    if heads > 1:
        cos = jnp.repeat(cos, heads, axis=0)          # (ts*heads, D)
        sin = jnp.repeat(sin, heads, axis=0)

    out = x.astype(jnp.float32) * cos[None] + rot.astype(jnp.float32) * sin[None]
    o_ref[...] = out.astype(o_ref.dtype)


def make_inv_freq(dim):
    # deterministic "buffer" init, exactly as in the PyTorch __init__
    return 1.0 / (10000.0 ** (jnp.arange(0, dim, 2, dtype=jnp.float32) / dim))


def _scoped_vmem_limit():
    """64 MiB on 128-MiB-VMEM chips (v5e/v6e), 32 MiB on v7x (64 MiB physical)."""
    try:
        cap = pltpu.get_tpu_info().vmem_capacity_bytes
    except Exception:                     # conservative fallback, safe everywhere
        cap = 64 * 1024 * 1024
    return int(min(64 * 1024 * 1024, max(32 * 1024 * 1024, cap // 2)))


def _choose_seq_tile(S, B, H, D, itemsize, vmem_limit):
    """Sequence positions per x tile.

    Constraints: payload ts*H*D*itemsize near ~vmem_limit/12 (double-buffered
    in/out blocks + f32 temporaries fit the scoped budget on every chip), ts a
    multiple of 8 that divides S when possible (dense, unmasked stores), and
    >= ~8 total grid steps so v7x's 2 TensorCores / cross-step DMA overlap are used.
    """
    bytes_per_pos = H * D * itemsize
    target = max(1 << 20, min(8 << 20, vmem_limit // 12))
    cap = max(8, (target // bytes_per_pos) // 8 * 8)
    steps_per_batch = -(-8 // B)                       # ceil(8 / B)
    cap_steps = max(8, (S // steps_per_batch) // 8 * 8)
    cap = min(cap, cap_steps)
    if cap >= S:
        return S
    for t in range(cap, 7, -8):                        # largest mult-of-8 divisor
        if S % t == 0:
            return t
    return cap   # no such divisor: accept one ragged tail block (Pallas masks it)


def rotary_positional_embedding(x, inv_freq, donate_x=False):
    """Apply RoPE to x of shape (batch, seq, heads, head_dim).

    donate_x=True only gives true in-place behavior if the caller actually
    donates x at the jit boundary (donate_argnums); otherwise XLA copies.
    """
    B, S, H, D = x.shape

    # Precompute trig tables once (depend only on S and D, not B or H).
    t = jnp.arange(S, dtype=jnp.float32)
    freqs = t[:, None] * inv_freq.astype(jnp.float32)[None, :]    # (S, D//2)
    cos_h = jnp.cos(freqs)
    sin_h = jnp.sin(freqs)
    cos_full = jnp.concatenate([cos_h, cos_h], axis=-1)            # (S, D)
    sin_signed = jnp.concatenate([-sin_h, sin_h], axis=-1)         # (S, D)

    vmem_limit = _scoped_vmem_limit()
    ts = _choose_seq_tile(S, B, H, D, jnp.dtype(x.dtype).itemsize, vmem_limit)
    rows = ts * H
    grid = (pl.cdiv(S, ts), B)   # seq tiles OUTER -> cos/sin DMA'd once per tile

    x_folded = x.reshape(B, S * H, D)   # contiguous, free

    # TODO(synk): for head_dim < 128 the last dim is lane-sparse; packing two
    # heads per 128-lane group needs a strided/segmented roll and is left out.
    call = pl.pallas_call(
        functools.partial(rope_kernel, heads=H),
        out_shape=jax.ShapeDtypeStruct((B, S * H, D), x.dtype),
        grid=grid,
        in_specs=[
            pl.BlockSpec((ts, D), lambda s, b: (s, 0)),            # cos
            pl.BlockSpec((ts, D), lambda s, b: (s, 0)),            # sin (sign-folded)
            pl.BlockSpec((1, rows, D), lambda s, b: (b, s, 0)),    # x (folded heads)
        ],
        out_specs=pl.BlockSpec((1, rows, D), lambda s, b: (b, s, 0)),
        compiler_params=pltpu.CompilerParams(
            dimension_semantics=("parallel", "parallel"),
            vmem_limit_bytes=vmem_limit,
        ),
        input_output_aliases=({2: 0} if donate_x else {}),
    )
    out = call(cos_full, sin_signed, x_folded)
    return out.reshape(B, S, H, D)


def rope_reference(x, inv_freq):
    # pure-JAX reference mirroring the PyTorch forward
    S = x.shape[1]
    t = jnp.arange(S, dtype=inv_freq.dtype)
    freqs = jnp.einsum("i,j->ij", t, inv_freq)
    emb = jnp.concatenate([freqs, freqs], axis=-1)[None, :, None, :]
    cos, sin = jnp.cos(emb), jnp.sin(emb)
    half = x.shape[-1] // 2
    x1, x2 = x[..., :half], x[..., half:]
    rotated = jnp.concatenate([-x2, x1], axis=-1)
    return x * cos + rotated * sin


if __name__ == "__main__":
    B, S, H, D = 2, 8, 4, 128
    key = jax.random.PRNGKey(0)
    x = jax.random.normal(key, (B, S, H, D), dtype=jnp.float32)

    inv_freq = make_inv_freq(D)
    ref = rope_reference(x, inv_freq)

    out = rotary_positional_embedding(x, inv_freq)
    out = jax.block_until_ready(out)

    assert out.shape == x.shape and out.dtype == x.dtype
    assert jnp.allclose(out, ref, atol=1e-5, rtol=1e-5)
    print("KERNEL_OK")
</pallas_src>

<mosaic_0001>
module attributes {stable_mosaic.version = 11 : i64} {
  func.func @rope_kernel(%arg0: i32, %arg1: i32, %arg2: memref<8x128xf32, #tpu.memory_space<vmem>>, %arg3: memref<8x128xf32, #tpu.memory_space<vmem>>, %arg4: memref<1x32x128xf32, #tpu.memory_space<vmem>>, %arg5: memref<1x32x128xf32, #tpu.memory_space<vmem>>) attributes {dimension_semantics = [#tpu.dimension_semantics<parallel>, #tpu.dimension_semantics<parallel>], iteration_bounds = array<i64: 1, 2>, scalar_prefetch = 0 : i64, scratch_operands = 0 : i64, tpu.core_type = #tpu.core_type<tc>, window_params = [{transform_indices = @transform_0, window_bounds = array<i64: 8, 128>}, {transform_indices = @transform_1, window_bounds = array<i64: 8, 128>}, {transform_indices = @transform_2, window_bounds = array<i64: 1, 32, 128>}, {transform_indices = @transform_3, window_bounds = array<i64: 1, 32, 128>}]} {
    %c0 = arith.constant 0 : index
    %c0_0 = arith.constant 0 : index
    %c0_1 = arith.constant 0 : index
    %0 = vector.load %arg4[%c0, %c0_0, %c0_1] : memref<1x32x128xf32, #tpu.memory_space<vmem>>, vector<1x32x128xf32>
    %c64_i32 = arith.constant 64 : i32
    %1 = tpu.dynamic_rotate %0 by %c64_i32 dim 2 : vector<1x32x128xf32>, i32 -> vector<1x32x128xf32>
    %c0_2 = arith.constant 0 : index
    %c0_3 = arith.constant 0 : index
    %2 = vector.load %arg2[%c0_2, %c0_3] : memref<8x128xf32, #tpu.memory_space<vmem>>, vector<8x128xf32>
    %c0_4 = arith.constant 0 : index
    %c0_5 = arith.constant 0 : index
    %3 = vector.load %arg3[%c0_4, %c0_5] : memref<8x128xf32, #tpu.memory_space<vmem>>, vector<8x128xf32>
    %4 = vector.shape_cast %2 : vector<8x128xf32> to vector<8x1x128xf32>
    %5 = vector.broadcast %4 : vector<8x1x128xf32> to vector<8x4x128xf32>
    %6 = vector.shape_cast %5 : vector<8x4x128xf32> to vector<32x128xf32>
    %7 = vector.shape_cast %3 : vector<8x128xf32> to vector<8x1x128xf32>
    %8 = vector.broadcast %7 : vector<8x1x128xf32> to vector<8x4x128xf32>
    %9 = vector.shape_cast %8 : vector<8x4x128xf32> to vector<32x128xf32>
    %10 = vector.shape_cast %6 : vector<32x128xf32> to vector<1x32x128xf32>
    %11 = arith.mulf %0, %10 : vector<1x32x128xf32>
    %12 = vector.shape_cast %9 : vector<32x128xf32> to vector<1x32x128xf32>
    %13 = arith.mulf %1, %12 : vector<1x32x128xf32>
    %14 = arith.addf %11, %13 : vector<1x32x128xf32>
    %c0_6 = arith.constant 0 : index
    %c0_7 = arith.constant 0 : index
    %c0_8 = arith.constant 0 : index
    %15 = vector.load %arg5[%c0_6, %c0_7, %c0_8] : memref<1x32x128xf32, #tpu.memory_space<vmem>>, vector<1x32x128xf32>
    tpu.vector_store %arg5[%c0_6, %c0_7, %c0_8], %14 {strides = array<i32>} : memref<1x32x128xf32, #tpu.memory_space<vmem>>, vector<1x32x128xf32>,
    return
  }
  func.func @transform_0(%arg0: i32, %arg1: i32) -> (i32, i32) {
    %c0_i32 = arith.constant 0 : i32
    %c0_i32_0 = arith.constant 0 : i32
    return %arg0, %c0_i32 : i32, i32
  }
  func.func @transform_1(%arg0: i32, %arg1: i32) -> (i32, i32) {
    %c0_i32 = arith.constant 0 : i32
    %c0_i32_0 = arith.constant 0 : i32
    return %arg0, %c0_i32 : i32, i32
  }
  func.func @transform_2(%arg0: i32, %arg1: i32) -> (i32, i32, i32) {
    %c0_i32 = arith.constant 0 : i32
    %c0_i32_0 = arith.constant 0 : i32
    return %arg1, %arg0, %c0_i32 : i32, i32, i32
  }
  func.func @transform_3(%arg0: i32, %arg1: i32) -> (i32, i32, i32) {
    %c0_i32 = arith.constant 0 : i32
    %c0_i32_0 = arith.constant 0 : i32
    return %arg1, %arg0, %c0_i32 : i32, i32, i32
  }
}

</mosaic_0001>

<llo_original>
// kernel: tpu_custom_call.1
$region0: #{tpu_custom_call.1}
  #allocation0 [shape = 'u32[]', space=smem, size = 0x4, offset = 0x4, fixed_abs, tag = 'smem constant byte address 0x4 - core index']
  #allocation1 [shape = 'u32[144,128]{1,0:T(1,128)}', space=vmem, size = 0x12000, scoped, tag = 'internal scratch']
  %s0 = inlined_call_operand.hbm [shape: f32[8,128], index: 0, kind: input, shape index: {}]
  %s1 = inlined_call_operand.hbm [shape: f32[8,128], index: 1, kind: input, shape index: {}]
  %s2 = inlined_call_operand.hbm [shape: f32[2,32,128], index: 2, kind: input, shape index: {}]
  %s3 = inlined_call_operand.hbm [shape: f32[2,32,128], index: 3, kind: output, shape index: {}]
  %s4 = sld [smem:[#allocation0]]
  $region57: #{tpu_custom_call.1} parent=0
    _
  %s6 = ssub.s32 1, %s4
  %s7 = scalar_select 0, %s6, %s4
  $region1: #{tpu_custom_call.1} parent=0
    #allocation2 [shape = 'u8[4096]{0}', space=vmem, size = 0x1000, scoped, tag = 'input window, operand 0, single buffered']
    #allocation3 [shape = 's32[2]{0}', space=sflag, size = 0x8, scoped, tag = 'scoped memory for tpu_custom_call.1']
    #allocation4 [shape = 's32[2]{0}', space=sflag, size = 0x8, scoped, tag = 'scoped memory for tpu_custom_call.1']
    #allocation5 [shape = 'u8[4096]{0}', space=vmem, size = 0x1000, scoped, tag = 'input window, operand 1, single buffered']
    #allocation6 [shape = 's32[1]{0}', space=sflag, size = 0x4, scoped, tag = 'scoped memory for tpu_custom_call.1']
    #allocation7 [shape = 'u8[32768]{0}', space=vmem, size = 0x8000, scoped, tag = 'input window, operand 2']
    #allocation8 [shape = 'u8[32768]{0}', space=vmem, size = 0x8000, scoped, tag = 'output window, operand 0']
    %8 = vsyncpa [#allocation3], 0
    %9 = vsyncpa [#allocation6], 0
    %10 = vsyncpa [#allocation4], 0
    %s11 = scalar_lea.sflag [#allocation4], 1
    %12 = vsyncpa %s11, 0
    loop: start=0, step=1, limit=4
    $region2: #{tpu_custom_call.1} parent=1 // loop_pre_header
      _
    $region3: #{tpu_custom_call.1} parent=1 // loop_header
      %s14 = sphi 0, %s18
      %p15 = scmp.ge.s32.totalorder %s14, 4
      %s21 = sphi 0, %s33
      %s22 = sphi 0, %s29
      %s23 = sphi 0, %s21
      %s24 = sphi 0, %s22
      %s25 = sphi 0, %s23
      %s26 = sphi 0, %s24
      %s36 = sphi 0, %s38
      %s39 = sphi 0, %s36
      %s40 = sphi 0, %s39
      %s56 = sphi 0, %s40
      %s62 = sphi 0, %s64
      %s65 = sphi 0, %s62
      %s66 = sphi 0, %s65
      %s82 = sphi 0, %s66
      %s90 = sphi 0, %s92
      %s93 = sphi 0, %s90
      %s94 = sphi 0, %s93
      %s110 = sphi 0, %s94
      %s118 = sphi 0, %s120
      %s121 = sphi 0, %s118
      %s122 = sphi 0, %s121
      %s138 = sphi 0, %s122
    $region4: #{tpu_custom_call.1} parent=1 // loop_header_branch
      %17 = sbr.rel (%p15) target = $region8
    $region5: #{tpu_custom_call.1} parent=1 // loop_body
      %s19 = ssub.s32 %s14, 1
      %s20 = ssub.s32 %s14, 2
      %s27 = sadd.s32 1, %s22
      %p28 = scmp.ge.s32.totalorder %s27, 2
      %s29 = scalar_select %p28, 0, %s27
      %s30 = sadd.s32 1, %s21
      %s31 = scalar_select %p28, %s30, %s21
      %p32 = scmp.ge.s32.totalorder %s31, 1
      %s33 = scalar_select %p32, 0, %s31
      %s34 = ssub.s32 %s21, %s33
      %p35 = scmp.eq.s32.totalorder %s34, 0
      %s37 = sadd.s32 %s36, 1
      %s38 = scalar_select %p35, %s36, %s37
      %p41 = pneg %p35
      %p42 = scmp.eq.s32.totalorder %s14, 1
      %p43 = por %p41, %p42
      %p44 = scmp.ne.s32.totalorder %s36, %s39
      %p45 = scmp.eq.s32.totalorder %s14, 0
      %p46 = por %p44, %p45
      %p47 = scmp.ne.s32.totalorder %s36, %s39
      %p48 = scmp.eq.s32.totalorder %s19, 1
      %p49 = por %p47, %p48
      %p50 = scmp.ne.s32.totalorder %s39, %s40
      %p51 = scmp.eq.s32.totalorder %s19, 0
      %p52 = por %p50, %p51
      %p53 = scmp.ne.s32.totalorder %s39, %s40
      %p54 = scmp.eq.s32.totalorder %s20, 1
      %p55 = por %p53, %p54
      %p57 = scmp.ne.s32.totalorder %s40, %s56
      %p58 = scmp.eq.s32.totalorder %s20, 0
      %p59 = por %p57, %p58
      %s60 = ssub.s32 %s21, %s33
      %p61 = scmp.eq.s32.totalorder %s60, 0
      %s63 = sadd.s32 %s62, 1
      %s64 = scalar_select %p61, %s62, %s63
      %p67 = pneg %p61
      %p68 = scmp.eq.s32.totalorder %s14, 1
      %p69 = por %p67, %p68
      %p70 = scmp.ne.s32.totalorder %s62, %s65
      %p71 = scmp.eq.s32.totalorder %s14, 0
      %p72 = por %p70, %p71
      %p73 = scmp.ne.s32.totalorder %s62, %s65
      %p74 = scmp.eq.s32.totalorder %s19, 1
      %p75 = por %p73, %p74
      %p76 = scmp.ne.s32.totalorder %s65, %s66
      %p77 = scmp.eq.s32.totalorder %s19, 0
      %p78 = por %p76, %p77
      %p79 = scmp.ne.s32.totalorder %s65, %s66
      %p80 = scmp.eq.s32.totalorder %s20, 1
      %p81 = por %p79, %p80
      %p83 = scmp.ne.s32.totalorder %s66, %s82
      %p84 = scmp.eq.s32.totalorder %s20, 0
      %p85 = por %p83, %p84
      %s86 = ssub.s32 %s22, %s29
      %s87 = ssub.s32 %s21, %s33
      %s88 = sor.u32 %s86, %s87
      %p89 = scmp.eq.s32.totalorder %s88, 0
      %s91 = sadd.s32 %s90, 1
      %s92 = scalar_select %p89, %s90, %s91
      %p95 = pneg %p89
      %p96 = scmp.eq.s32.totalorder %s14, 1
      %p97 = por %p95, %p96
      %p98 = scmp.ne.s32.totalorder %s90, %s93
      %p99 = scmp.eq.s32.totalorder %s14, 0
      %p100 = por %p98, %p99
      %p101 = scmp.ne.s32.totalorder %s90, %s93
      %p102 = scmp.eq.s32.totalorder %s19, 1
      %p103 = por %p101, %p102
      %p104 = scmp.ne.s32.totalorder %s93, %s94
      %p105 = scmp.eq.s32.totalorder %s19, 0
      %p106 = por %p104, %p105
      %p107 = scmp.ne.s32.totalorder %s93, %s94
      %p108 = scmp.eq.s32.totalorder %s20, 1
      %p109 = por %p107, %p108
      %p111 = scmp.ne.s32.totalorder %s94, %s110
      %p112 = scmp.eq.s32.totalorder %s20, 0
      %p113 = por %p111, %p112
      %s114 = ssub.s32 %s22, %s29
      %s115 = ssub.s32 %s21, %s33
      %s116 = sor.u32 %s114, %s115
      %p117 = scmp.eq.s32.totalorder %s116, 0
      %s119 = sadd.s32 %s118, 1
      %s120 = scalar_select %p117, %s118, %s119
      %p123 = pneg %p117
      %p124 = scmp.eq.s32.totalorder %s14, 1
      %p125 = por %p123, %p124
      %p126 = scmp.ne.s32.totalorder %s118, %s121
      %p127 = scmp.eq.s32.totalorder %s14, 0
      %p128 = por %p126, %p127
      %p129 = scmp.ne.s32.totalorder %s118, %s121
      %p130 = scmp.eq.s32.totalorder %s19, 1
      %p131 = por %p129, %p130
      %p132 = scmp.ne.s32.totalorder %s121, %s122
      %p133 = scmp.eq.s32.totalorder %s19, 0
      %p134 = por %p132, %p133
      %p135 = scmp.ne.s32.totalorder %s121, %s122
      %p136 = scmp.eq.s32.totalorder %s20, 1
      %p137 = por %p135, %p136
      %p139 = scmp.ne.s32.totalorder %s122, %s138
      %p140 = scmp.eq.s32.totalorder %s20, 0
      %p141 = por %p139, %p140
      %p142 = scmp.le.s32.totalorder 1, %s14
      %p143 = scmp.lt.s32.totalorder %s14, 3
      %p144 = pnand %p142, %p143
      %p145 = pneg %p144
      // Predicated region
      $region9: #{tpu_custom_call.1} parent=5 // pred_check
        _
      $region10: #{tpu_custom_call.1} parent=5 // pred_check_branch
        %147 = sbr.rel (%p144) target = $region12
      $region11: #{tpu_custom_call.1} parent=5 // pred_region
        %s148 = ssub.s32 %s14, 1
        // Predicated region
        $region13: #{tpu_custom_call.1} parent=11 // pred_check
          %p149 = pneg %p52
        $region14: #{tpu_custom_call.1} parent=11 // pred_check_branch
          %151 = sbr.rel (%p149) target = $region16
        $region15: #{tpu_custom_call.1} parent=11 // pred_region
          %s153 = ssub.s32 128, 128
          %154 = vsyncadd [#allocation3], %s153
          %s155 = smul.addr %s23, 128
          %s156 = scalar_lea.hbm %s0, %s155
          %s158 = sshll.u32 [#allocation2], 4
          %s159 = int_to_ptr.vmem [resolvable:$true] %s158
          %161 = dma.hbm_to_vmem [thread:$0]  %s156, 128, %s159, [#allocation3]
        $region16: #{tpu_custom_call.1} parent=11 // pred_fallthru
          _
        // Predicated region
        $region17: #{tpu_custom_call.1} parent=11 // pred_check
          %p162 = pneg %p78
        $region18: #{tpu_custom_call.1} parent=11 // pred_check_branch
          %164 = sbr.rel (%p162) target = $region20
        $region19: #{tpu_custom_call.1} parent=11 // pred_region
          %s166 = ssub.s32 128, 128
          %167 = vsyncadd [#allocation6], %s166
          %s168 = smul.addr %s23, 128
          %s169 = scalar_lea.hbm %s1, %s168
          %s171 = sshll.u32 [#allocation5], 4
          %s172 = int_to_ptr.vmem [resolvable:$true] %s171
          %174 = dma.hbm_to_vmem [thread:$0]  %s169, 128, %s172, [#allocation6]
        $region20: #{tpu_custom_call.1} parent=11 // pred_fallthru
          _
      $region12: #{tpu_custom_call.1} parent=5 // pred_fallthru
        _
      %p175 = scmp.lt.s32.totalorder %s14, 2
      // Predicated region
      $region21: #{tpu_custom_call.1} parent=5 // pred_check
        %p176 = pneg %p175
      $region22: #{tpu_custom_call.1} parent=5 // pred_check_branch
        %178 = sbr.rel (%p176) target = $region24
      $region23: #{tpu_custom_call.1} parent=5 // pred_region
        // Predicated region
        $region25: #{tpu_custom_call.1} parent=23 // pred_check
          %p179 = pneg %p100
        $region26: #{tpu_custom_call.1} parent=23 // pred_check_branch
          %181 = sbr.rel (%p179) target = $region28
        $region27: #{tpu_custom_call.1} parent=23 // pred_region
          %s182 = sand.u32 %s14, 1
          %s183 = scalar_lea.sflag [#allocation3], %s182
          %s184 = sand.u32 %s90, 1
          %s185 = smul.addr %s184, 32
          %s186 = scalar_lea.vmem [#allocation7], %s185
          %s187 = smul.u32 4, %s21
          %s189 = ssub.s32 512, 512
          %190 = vsyncadd %s183, %s189
          %s191 = smul.addr %s22, 4
          %s192 = sadd.s32 %s187, %s191
          %s193 = smul.addr %s192, 128
          %s194 = scalar_lea.hbm %s2, %s193
          %s195 = sshll.u32 %s186, 4
          %s196 = int_to_ptr.vmem [resolvable:$true] %s195
          %201 = dma.hbm_to_vmem [thread:$0]  %s194, 512, %s196, %s183, 128, 128, 8
        $region28: #{tpu_custom_call.1} parent=23 // pred_fallthru
          _
      $region24: #{tpu_custom_call.1} parent=5 // pred_fallthru
        _
      %p202 = scmp.le.s32.totalorder 1, %s14
      %p203 = scmp.lt.s32.totalorder %s14, 3
      %p204 = pnand %p202, %p203
      %p205 = pneg %p204
      // Predicated region
      $region29: #{tpu_custom_call.1} parent=5 // pred_check
        _
      $region30: #{tpu_custom_call.1} parent=5 // pred_check_branch
        %207 = sbr.rel (%p204) target = $region32
      $region31: #{tpu_custom_call.1} parent=5 // pred_region
        %s208 = ssub.s32 %s14, 1
        // Predicated region
        $region33: #{tpu_custom_call.1} parent=31 // pred_check
          %p209 = pneg %p52
        $region34: #{tpu_custom_call.1} parent=31 // pred_check_branch
          %211 = sbr.rel (%p209) target = $region36
        $region35: #{tpu_custom_call.1} parent=31 // pred_region
          %212 = dma.done [#allocation3], 128
        $region36: #{tpu_custom_call.1} parent=31 // pred_fallthru
          _
        // Predicated region
        $region37: #{tpu_custom_call.1} parent=31 // pred_check
          %p213 = pneg %p78
        $region38: #{tpu_custom_call.1} parent=31 // pred_check_branch
          %215 = sbr.rel (%p213) target = $region40
        $region39: #{tpu_custom_call.1} parent=31 // pred_region
          %216 = dma.done [#allocation6], 128
        $region40: #{tpu_custom_call.1} parent=31 // pred_fallthru
          _
        %s217 = sand.u32 %s19, 1
        %s218 = scalar_lea.sflag [#allocation3], %s217
        %s219 = sand.u32 %s93, 1
        %s220 = smul.addr %s219, 32
        %s221 = scalar_lea.vmem [#allocation7], %s220
        // Predicated region
        $region41: #{tpu_custom_call.1} parent=31 // pred_check
          %p222 = pneg %p106
        $region42: #{tpu_custom_call.1} parent=31 // pred_check_branch
          %224 = sbr.rel (%p222) target = $region44
        $region43: #{tpu_custom_call.1} parent=31 // pred_region
          %225 = dma.done %s218, 512
        $region44: #{tpu_custom_call.1} parent=31 // pred_fallthru
          _
        %p226 = pneg %p52
        %p227 = pneg %p49
        %p228 = pneg %p78
        %p229 = pneg %p75
        %s230 = sand.u32 %s19, 1
        %s231 = scalar_lea.sflag [#allocation3], %s230
        %s232 = sand.u32 %s93, 1
        %s233 = smul.addr %s232, 32
        %s234 = scalar_lea.vmem [#allocation7], %s233
        %p235 = pneg %p106
        %p236 = pneg %p103
        %p237 = pneg %p134
        %p238 = pneg %p131
        %s239 = sand.u32 %s121, 1
        %s240 = scalar_lea.sflag [#allocation4], %s239
        %s241 = sand.u32 %s121, 1
        %s242 = smul.addr %s241, 32
        %s243 = scalar_lea.vmem [#allocation8], %s242
        %s244 = smul.u32 4, %s23
        %s245 = smul.u32 4, %s23
        %v246 = vld [vmem:[%s221] sm:$0xff]
        %v247 = vld [vmem:[%s221 + $0x8] sm:$0xff]
        %v248 = vld [vmem:[%s221 + $0x10] sm:$0xff]
        %v249 = vld [vmem:[%s221 + $0x18] sm:$0xff]
        %250 = vrot.lane.b32.xlu0 %v246, 64
        %v251 = vpop.permute.xlu0 %250
        %252 = vrot.lane.b32.xlu0 %v247, 64
        %v253 = vpop.permute.xlu0 %252
        %254 = vrot.lane.b32.xlu0 %v248, 64
        %v255 = vpop.permute.xlu0 %254
        %256 = vrot.lane.b32.xlu0 %v249, 64
        %v257 = vpop.permute.xlu0 %256
        %v258 = vld [vmem:[#allocation2] sm:$0xff]
        %v259 = vld [vmem:[#allocation5] sm:$0xff]
        %v261 = vcombine.high %v258, %v258
        %v263 = vunpack.c.l.s4 1966171168
        %v264 = vunpack.c.0.s8 %v263
        %v265 = vlaneseq
        %v266 = vshrl.u32 %v265, 7
        %v267 = vsub.s32 %v264, %v266
        %v268 = vrot.slane %v258, %v267
        %v270 = vunpack.c.l.s4 1966171168
        %v271 = vunpack.c.0.s8 %v270
        %v272 = vlaneseq
        %v273 = vshrl.u32 %v272, 7
        %v274 = vsub.s32 %v271, %v273
        %v275 = vrot.slane %v261, %v274
        %v276 = vcombine.high %v268, %v268
        %v277 = vcombine.high %v275, %v275
        %v279 = vunpack.c.l.s4 1966171168
        %v280 = vunpack.c.0.s8 %v279
        %v281 = vlaneseq
        %v282 = vshrl.u32 %v281, 7
        %v283 = vsub.s32 %v280, %v282
        %v284 = vrot.slane %v268, %v283
        %v286 = vunpack.c.l.s4 1966171168
        %v287 = vunpack.c.0.s8 %v286
        %v288 = vlaneseq
        %v289 = vshrl.u32 %v288, 7
        %v290 = vsub.s32 %v287, %v289
        %v291 = vrot.slane %v275, %v290
        %v293 = vunpack.c.l.s4 1966171168
        %v294 = vunpack.c.0.s8 %v293
        %v295 = vlaneseq
        %v296 = vshrl.u32 %v295, 7
        %v297 = vsub.s32 %v294, %v296
        %v298 = vrot.slane %v276, %v297
        %v300 = vunpack.c.l.s4 1966171168
        %v301 = vunpack.c.0.s8 %v300
        %v302 = vlaneseq
        %v303 = vshrl.u32 %v302, 7
        %v304 = vsub.s32 %v301, %v303
        %v305 = vrot.slane %v277, %v304
        %v306 = vcombine.high %v284, %v284
        %v307 = vcombine.high %v291, %v291
        %v308 = vcombine.high %v298, %v298
        %v309 = vcombine.high %v305, %v305
        %v310 = vlaneseq
        %v311 = vshrl.u32 %v310, 7
        %v312 = vsub.s32 0, %v311
        %v313 = vrot.slane %v284, %v312
        %v314 = vlaneseq
        %v315 = vshrl.u32 %v314, 7
        %v316 = vsub.s32 0, %v315
        %v317 = vrot.slane %v298, %v316
        %v318 = vlaneseq
        %v319 = vshrl.u32 %v318, 7
        %v320 = vsub.s32 0, %v319
        %v321 = vrot.slane %v306, %v320
        %v322 = vlaneseq
        %v323 = vshrl.u32 %v322, 7
        %v324 = vsub.s32 0, %v323
        %v325 = vrot.slane %v308, %v324
        %v326 = vlaneseq
        %v327 = vshrl.u32 %v326, 7
        %v328 = vsub.s32 0, %v327
        %v329 = vrot.slane %v291, %v328
        %v330 = vlaneseq
        %v331 = vshrl.u32 %v330, 7
        %v332 = vsub.s32 0, %v331
        %v333 = vrot.slane %v305, %v332
        %v334 = vlaneseq
        %v335 = vshrl.u32 %v334, 7
        %v336 = vsub.s32 0, %v335
        %v337 = vrot.slane %v307, %v336
        %v338 = vlaneseq
        %v339 = vshrl.u32 %v338, 7
        %v340 = vsub.s32 0, %v339
        %v341 = vrot.slane %v309, %v340
        %v343 = vcombine.high %v259, %v259
        %v345 = vunpack.c.l.s4 1966171168
        %v346 = vunpack.c.0.s8 %v345
        %v347 = vlaneseq
        %v348 = vshrl.u32 %v347, 7
        %v349 = vsub.s32 %v346, %v348
        %v350 = vrot.slane %v259, %v349
        %v352 = vunpack.c.l.s4 1966171168
        %v353 = vunpack.c.0.s8 %v352
        %v354 = vlaneseq
        %v355 = vshrl.u32 %v354, 7
        %v356 = vsub.s32 %v353, %v355
        %v357 = vrot.slane %v343, %v356
        %v358 = vcombine.high %v350, %v350
        %v359 = vcombine.high %v357, %v357
        %v361 = vunpack.c.l.s4 1966171168
        %v362 = vunpack.c.0.s8 %v361
        %v363 = vlaneseq
        %v364 = vshrl.u32 %v363, 7
        %v365 = vsub.s32 %v362, %v364
        %v366 = vrot.slane %v350, %v365
        %v368 = vunpack.c.l.s4 1966171168
        %v369 = vunpack.c.0.s8 %v368
        %v370 = vlaneseq
        %v371 = vshrl.u32 %v370, 7
        %v372 = vsub.s32 %v369, %v371
        %v373 = vrot.slane %v357, %v372
        %v375 = vunpack.c.l.s4 1966171168
        %v376 = vunpack.c.0.s8 %v375
        %v377 = vlaneseq
        %v378 = vshrl.u32 %v377, 7
        %v379 = vsub.s32 %v376, %v378
        %v380 = vrot.slane %v358, %v379
        %v382 = vunpack.c.l.s4 1966171168
        %v383 = vunpack.c.0.s8 %v382
        %v384 = vlaneseq
        %v385 = vshrl.u32 %v384, 7
        %v386 = vsub.s32 %v383, %v385
        %v387 = vrot.slane %v359, %v386
        %v388 = vcombine.high %v366, %v366
        %v389 = vcombine.high %v373, %v373
        %v390 = vcombine.high %v380, %v380
        %v391 = vcombine.high %v387, %v387
        %v392 = vlaneseq
        %v393 = vshrl.u32 %v392, 7
        %v394 = vsub.s32 0, %v393
        %v395 = vrot.slane %v366, %v394
        %v396 = vlaneseq
        %v397 = vshrl.u32 %v396, 7
        %v398 = vsub.s32 0, %v397
        %v399 = vrot.slane %v380, %v398
        %v400 = vlaneseq
        %v401 = vshrl.u32 %v400, 7
        %v402 = vsub.s32 0, %v401
        %v403 = vrot.slane %v388, %v402
        %v404 = vlaneseq
        %v405 = vshrl.u32 %v404, 7
        %v406 = vsub.s32 0, %v405
        %v407 = vrot.slane %v390, %v406
        %v408 = vlaneseq
        %v409 = vshrl.u32 %v408, 7
        %v410 = vsub.s32 0, %v409
        %v411 = vrot.slane %v373, %v410
        %v412 = vlaneseq
        %v413 = vshrl.u32 %v412, 7
        %v414 = vsub.s32 0, %v413
        %v415 = vrot.slane %v387, %v414
        %v416 = vlaneseq
        %v417 = vshrl.u32 %v416, 7
        %v418 = vsub.s32 0, %v417
        %v419 = vrot.slane %v389, %v418
        %v420 = vlaneseq
        %v421 = vshrl.u32 %v420, 7
        %v422 = vsub.s32 0, %v421
        %v423 = vrot.slane %v391, %v422
        %v424 = vcombine.low %v313, %v317
        %v425 = vcombine.low %v321, %v325
        %v426 = vcombine.low %v329, %v333
        %v427 = vcombine.low %v337, %v341
        %v432 = vmul.f32 %v246, %v424
        %v433 = vmul.f32 %v247, %v425
        %v434 = vmul.f32 %v248, %v426
        %v435 = vmul.f32 %v249, %v427
        %v436 = vcombine.low %v395, %v399
        %v437 = vcombine.low %v403, %v407
        %v438 = vcombine.low %v411, %v415
        %v439 = vcombine.low %v419, %v423
        %v444 = vmul.f32 %v251, %v436
        %v445 = vmul.f32 %v253, %v437
        %v446 = vmul.f32 %v255, %v438
        %v447 = vmul.f32 %v257, %v439
        %v448 = vadd.f32 %v432, %v444
        %v449 = vadd.f32 %v433, %v445
        %v450 = vadd.f32 %v434, %v446
        %v451 = vadd.f32 %v435, %v447
        %452 = vst [vmem:[%s243] sm:$0xff] %v448
        %453 = vst [vmem:[%s243 + $0x8] sm:$0xff] %v449
        %454 = vst [vmem:[%s243 + $0x10] sm:$0xff] %v450
        %455 = vst [vmem:[%s243 + $0x18] sm:$0xff] %v451
        %s456 = sand.u32 %s121, 1
        %s457 = scalar_lea.sflag [#allocation4], %s456
        %s458 = sand.u32 %s121, 1
        %s459 = smul.addr %s458, 32
        %s460 = scalar_lea.vmem [#allocation8], %s459
        // Predicated region
        $region45: #{tpu_custom_call.1} parent=31 // pred_check
          %p461 = pneg %p131
        $region46: #{tpu_custom_call.1} parent=31 // pred_check_branch
          %463 = sbr.rel (%p461) target = $region48
        $region47: #{tpu_custom_call.1} parent=31 // pred_region
          %s464 = smul.u32 4, %s23
          %s466 = ssub.s32 512, 512
          %467 = vsyncadd %s457, %s466
          %s468 = smul.addr %s24, 4
          %s469 = sadd.s32 %s464, %s468
          %s470 = smul.addr %s469, 128
          %s471 = scalar_lea.hbm %s3, %s470
          %s472 = sshll.u32 %s460, 4
          %s473 = int_to_ptr.vmem [resolvable:$true] %s472
          %478 = dma.vmem_to_hbm [thread:$0]  %s473, 512, %s471, %s457, 128, 128, 8
        $region48: #{tpu_custom_call.1} parent=31 // pred_fallthru
          _
      $region32: #{tpu_custom_call.1} parent=5 // pred_fallthru
        _
      %p479 = scmp.le.s32.totalorder 2, %s14
      // Predicated region
      $region49: #{tpu_custom_call.1} parent=5 // pred_check
        %p480 = pneg %p479
      $region50: #{tpu_custom_call.1} parent=5 // pred_check_branch
        %482 = sbr.rel (%p480) target = $region52
      $region51: #{tpu_custom_call.1} parent=5 // pred_region
        %s483 = ssub.s32 %s14, 2
        // Predicated region
        $region53: #{tpu_custom_call.1} parent=51 // pred_check
          %p484 = pneg %p137
        $region54: #{tpu_custom_call.1} parent=51 // pred_check_branch
          %486 = sbr.rel (%p484) target = $region56
        $region55: #{tpu_custom_call.1} parent=51 // pred_region
          %s487 = sand.u32 %s122, 1
          %s488 = scalar_lea.sflag [#allocation4], %s487
          %s489 = sand.u32 %s122, 1
          %s490 = smul.addr %s489, 32
          %s491 = scalar_lea.vmem [#allocation8], %s490
          %492 = dma.done %s488, 512
        $region56: #{tpu_custom_call.1} parent=51 // pred_fallthru
          _
      $region52: #{tpu_custom_call.1} parent=5 // pred_fallthru
        _
    $region6: #{tpu_custom_call.1} parent=1 // loop_footer
      %s18 = sadd.s32 1, %s14
    $region7: #{tpu_custom_call.1} parent=1 // loop_footer_branch
      %13 = sbr.rel target = $region3
    $region8: #{tpu_custom_call.1} parent=1 // loop_exit
      _
    %493 = vsyncpa [#allocation3], 1
    %s494 = scalar_lea.sflag [#allocation3], 1
    %495 = vsyncpa %s494, 1
    %496 = vsyncpa [#allocation6], 1
    %497 = vsyncpa [#allocation4], 1
    %s498 = scalar_lea.sflag [#allocation4], 1
    %499 = vsyncpa %s498, 1

</llo_original>
